<compile_context>
chip_gen: v7x
topology: tpu7x:2x2x1
jax: 0.10.0
libtpu: 0.0.40
codegen_flags: <defaults>
</compile_context>

<pallas_src>
import jax
import jax.numpy as jnp
from jax.experimental import pallas as pl
from jax.experimental.pallas import tpu as pltpu


def _round_up(x: int, m: int) -> int:
    return ((x + m - 1) // m) * m


def mlp_kernel(x_ref, wr_ref, br_ref, wo_ref, bo_ref, o_ref):
    x = x_ref[...]                                   # (TM, D_in) f32

    # Residual branch: h = x @ W_res + b_res  (bf16 MXU operands, f32 accum).
    h = jnp.dot(x.astype(jnp.bfloat16), wr_ref[...],
                preferred_element_type=jnp.float32) + br_ref[...]

    # mish(h) = h * tanh(softplus(h)); one exp + one approx reciprocal.
    u = jnp.exp(-jnp.abs(h))
    pos = h >= 0.0
    num = jnp.where(pos, 1.0 + 2.0 * u, u * (u + 2.0))
    den = jnp.where(pos, 1.0 + 2.0 * u + 2.0 * u * u, u * u + 2.0 * u + 2.0)
    mish_h = h * num * pl.reciprocal(den, approx=True)

    z = x + mish_h                                   # residual add in f32

    # Output branch: y = z @ W_out + b_out (lane-dense padded output).
    y = jnp.dot(z.astype(jnp.bfloat16), wo_ref[...],
                preferred_element_type=jnp.float32) + bo_ref[...]
    o_ref[...] = y.astype(o_ref.dtype)


def mlp_forward(x, w_res, b_res, w_out, b_out, *, tm_max=512):
    """x: (M, D_in); w_res: (D_in, D_in); b_res: (1, D_in);
    w_out: (D_in, D_out); b_out: (1, D_out). Returns (M, D_out) f32."""
    M, D_in = x.shape
    D_out = w_out.shape[1]
    LANE = 128

    # Lane-dense output: pad the output feature dim to a multiple of 128.
    D_out_p = _round_up(D_out, LANE)

    # Row tiling: TM rows per grid step (multiple of 8, capped at tm_max).
    tm = min(tm_max, _round_up(max(M, 1), 8))
    M_pad = _round_up(max(M, 1), tm)

    x_p = jnp.zeros((M_pad, D_in), jnp.float32).at[:M].set(x.astype(jnp.float32))
    wr = w_res.astype(jnp.bfloat16)
    br = b_res.astype(jnp.float32)
    wo = jnp.zeros((D_in, D_out_p), jnp.bfloat16).at[:, :D_out].set(
        w_out.astype(jnp.bfloat16))
    bo = jnp.zeros((1, D_out_p), jnp.float32).at[:, :D_out].set(
        b_out.astype(jnp.float32))

    out = pl.pallas_call(
        mlp_kernel,
        out_shape=jax.ShapeDtypeStruct((M_pad, D_out_p), jnp.float32),
        grid=(M_pad // tm,),
        in_specs=[
            pl.BlockSpec((tm, D_in), lambda i: (i, 0)),       # activation tile
            pl.BlockSpec((D_in, D_in), lambda i: (0, 0)),     # W_res  (resident)
            pl.BlockSpec((1, D_in), lambda i: (0, 0)),        # b_res  (resident)
            pl.BlockSpec((D_in, D_out_p), lambda i: (0, 0)),  # W_out  (resident)
            pl.BlockSpec((1, D_out_p), lambda i: (0, 0)),     # b_out  (resident)
        ],
        out_specs=pl.BlockSpec((tm, D_out_p), lambda i: (i, 0)),
        compiler_params=pltpu.CompilerParams(
            dimension_semantics=("parallel",),
            vmem_limit_bytes=32 * 1024 * 1024,
        ),
    )(x_p, wr, br, wo, bo)
    return out[:M, :D_out]


def readout_forward(batch_num_objects, object_embeddings,
                    w_res, b_res, w_out, b_out):
    """Full Readout forward: per-graph segment sum, then the residual-mish MLP."""
    # TODO(synk): the variable-length segment-sum aggregation (cumsum + gather
    # over a List[int]) stays in plain JAX/XLA; only the MLP runs in Pallas.
    counts = jnp.asarray(batch_num_objects, dtype=jnp.int32)
    cum_idx = jnp.cumsum(counts) - 1
    cs = jnp.cumsum(object_embeddings, axis=0)
    picked = jnp.take(cs, cum_idx, axis=0)
    agg = jnp.concatenate([picked[:1], picked[1:] - picked[:-1]], axis=0)
    return mlp_forward(agg, w_res, b_res, w_out, b_out)


def readout_reference(batch_num_objects, object_embeddings,
                      w_res, b_res, w_out, b_out):
    counts = jnp.asarray(batch_num_objects, dtype=jnp.int32)
    cum_idx = jnp.cumsum(counts) - 1
    cs = jnp.cumsum(object_embeddings, axis=0)
    picked = jnp.take(cs, cum_idx, axis=0)
    agg = jnp.concatenate([picked[:1], picked[1:] - picked[:-1]], axis=0)
    h = agg @ w_res + b_res
    sp = jnp.maximum(h, 0.0) + jnp.log1p(jnp.exp(-jnp.abs(h)))
    z = agg + h * jnp.tanh(sp)
    return z @ w_out + b_out


if __name__ == "__main__":
    # Small shapes consistent with the module: 8 graphs, 32 objects total,
    # input_size=32, output_size=16.
    input_size, output_size = 32, 16
    batch_num_objects = [3, 5, 2, 7, 4, 6, 1, 4]
    total_objects = sum(batch_num_objects)

    key = jax.random.PRNGKey(0)
    ke, k1, k2, k3, k4 = jax.random.split(key, 5)

    object_embeddings = jax.random.normal(
        ke, (total_objects, input_size), dtype=jnp.float32)

    # Deterministic PyTorch Linear-style uniform fan-in init; weights stored (in, out).
    bound = 1.0 / (input_size ** 0.5)
    w_res = jax.random.uniform(k1, (input_size, input_size), jnp.float32, -bound, bound)
    b_res = jax.random.uniform(k2, (1, input_size), jnp.float32, -bound, bound)
    w_out = jax.random.uniform(k3, (input_size, output_size), jnp.float32, -bound, bound)
    b_out = jax.random.uniform(k4, (1, output_size), jnp.float32, -bound, bound)

    y = readout_forward(batch_num_objects, object_embeddings,
                        w_res, b_res, w_out, b_out)
    jax.block_until_ready(y)

    y_ref = readout_reference(batch_num_objects, object_embeddings,
                              w_res, b_res, w_out, b_out)
    assert y.shape == (len(batch_num_objects), output_size)
    # bf16 MXU operands + approx reciprocal => compare to the f32 reference
    # with a bf16-scale tolerance.
    assert jnp.allclose(y, y_ref, atol=5e-2, rtol=5e-2), "mismatch vs reference"

    print("KERNEL_OK")
</pallas_src>

<mosaic_0001>
module attributes {stable_mosaic.version = 11 : i64} {
  func.func @mlp_kernel(%arg0: i32, %arg1: memref<8x32xf32, #tpu.memory_space<vmem>>, %arg2: memref<32x32xbf16, #tpu.memory_space<vmem>>, %arg3: memref<1x32xf32, #tpu.memory_space<vmem>>, %arg4: memref<32x128xbf16, #tpu.memory_space<vmem>>, %arg5: memref<1x128xf32, #tpu.memory_space<vmem>>, %arg6: memref<8x128xf32, #tpu.memory_space<vmem>>) attributes {dimension_semantics = [#tpu.dimension_semantics<parallel>], iteration_bounds = array<i64: 1>, scalar_prefetch = 0 : i64, scratch_operands = 0 : i64, tpu.core_type = #tpu.core_type<tc>, window_params = [{transform_indices = @transform_0, window_bounds = array<i64: 8, 32>}, {pipeline_mode = #tpu.pipeline_mode<synchronous>, transform_indices = @transform_1, window_bounds = array<i64: 32, 32>}, {pipeline_mode = #tpu.pipeline_mode<synchronous>, transform_indices = @transform_2, window_bounds = array<i64: 1, 32>}, {pipeline_mode = #tpu.pipeline_mode<synchronous>, transform_indices = @transform_3, window_bounds = array<i64: 32, 128>}, {pipeline_mode = #tpu.pipeline_mode<synchronous>, transform_indices = @transform_4, window_bounds = array<i64: 1, 128>}, {transform_indices = @transform_5, window_bounds = array<i64: 8, 128>}]} {
    %c0 = arith.constant 0 : index
    %c0_0 = arith.constant 0 : index
    %0 = vector.load %arg1[%c0, %c0_0] : memref<8x32xf32, #tpu.memory_space<vmem>>, vector<8x32xf32>
    %1 = arith.truncf %0 : vector<8x32xf32> to vector<8x32xbf16>
    %c0_1 = arith.constant 0 : index
    %c0_2 = arith.constant 0 : index
    %2 = vector.load %arg2[%c0_1, %c0_2] : memref<32x32xbf16, #tpu.memory_space<vmem>>, vector<32x32xbf16>
    %cst = arith.constant dense<0.000000e+00> : vector<8x32xf32>
    %3 = tpu.matmul %1, %2, %cst {dimension_numbers = #tpu.dot_dimension_numbers<[1], [0], [0], [1], [0, 0, 1, 1], [], []>} : vector<8x32xbf16>, vector<32x32xbf16>, vector<8x32xf32> -> vector<8x32xf32>
    %c0_3 = arith.constant 0 : index
    %c0_4 = arith.constant 0 : index
    %4 = vector.load %arg3[%c0_3, %c0_4] : memref<1x32xf32, #tpu.memory_space<vmem>>, vector<1x32xf32>
    %5 = vector.broadcast %4 : vector<1x32xf32> to vector<8x32xf32>
    %6 = arith.addf %3, %5 : vector<8x32xf32>
    %7 = math.absf %6 : vector<8x32xf32>
    %cst_5 = arith.constant 0.000000e+00 : f32
    %8 = vector.broadcast %cst_5 : f32 to vector<8x32xf32>
    %9 = arith.subf %8, %7 : vector<8x32xf32>
    %10 = math.exp %9 : vector<8x32xf32>
    %cst_6 = arith.constant 0.000000e+00 : f32
    %11 = vector.broadcast %cst_6 : f32 to vector<8x32xf32>
    %12 = arith.cmpf oge, %6, %11 : vector<8x32xf32>
    %cst_7 = arith.constant 2.000000e+00 : f32
    %13 = vector.broadcast %cst_7 : f32 to vector<8x32xf32>
    %14 = arith.mulf %13, %10 : vector<8x32xf32>
    %cst_8 = arith.constant 1.000000e+00 : f32
    %15 = vector.broadcast %cst_8 : f32 to vector<8x32xf32>
    %16 = arith.addf %15, %14 : vector<8x32xf32>
    %cst_9 = arith.constant 2.000000e+00 : f32
    %17 = vector.broadcast %cst_9 : f32 to vector<8x32xf32>
    %18 = arith.addf %10, %17 : vector<8x32xf32>
    %19 = arith.mulf %10, %18 : vector<8x32xf32>
    %20 = arith.select %12, %16, %19 : vector<8x32xi1>, vector<8x32xf32>
    %cst_10 = arith.constant 2.000000e+00 : f32
    %21 = vector.broadcast %cst_10 : f32 to vector<8x32xf32>
    %22 = arith.mulf %21, %10 : vector<8x32xf32>
    %cst_11 = arith.constant 1.000000e+00 : f32
    %23 = vector.broadcast %cst_11 : f32 to vector<8x32xf32>
    %24 = arith.addf %23, %22 : vector<8x32xf32>
    %cst_12 = arith.constant 2.000000e+00 : f32
    %25 = vector.broadcast %cst_12 : f32 to vector<8x32xf32>
    %26 = arith.mulf %25, %10 : vector<8x32xf32>
    %27 = arith.mulf %26, %10 : vector<8x32xf32>
    %28 = arith.addf %24, %27 : vector<8x32xf32>
    %29 = arith.mulf %10, %10 : vector<8x32xf32>
    %cst_13 = arith.constant 2.000000e+00 : f32
    %30 = vector.broadcast %cst_13 : f32 to vector<8x32xf32>
    %31 = arith.mulf %30, %10 : vector<8x32xf32>
    %32 = arith.addf %29, %31 : vector<8x32xf32>
    %cst_14 = arith.constant 2.000000e+00 : f32
    %33 = vector.broadcast %cst_14 : f32 to vector<8x32xf32>
    %34 = arith.addf %32, %33 : vector<8x32xf32>
    %35 = arith.select %12, %28, %34 : vector<8x32xi1>, vector<8x32xf32>
    %36 = arith.mulf %6, %20 : vector<8x32xf32>
    %37 = tpu.reciprocal %35 {approx = true} : vector<8x32xf32> -> vector<8x32xf32>
    %38 = arith.mulf %36, %37 : vector<8x32xf32>
    %39 = arith.addf %0, %38 : vector<8x32xf32>
    %40 = arith.truncf %39 : vector<8x32xf32> to vector<8x32xbf16>
    %c0_15 = arith.constant 0 : index
    %c0_16 = arith.constant 0 : index
    %41 = vector.load %arg4[%c0_15, %c0_16] : memref<32x128xbf16, #tpu.memory_space<vmem>>, vector<32x128xbf16>
    %cst_17 = arith.constant dense<0.000000e+00> : vector<8x128xf32>
    %42 = tpu.matmul %40, %41, %cst_17 {dimension_numbers = #tpu.dot_dimension_numbers<[1], [0], [0], [1], [0, 0, 1, 1], [], []>} : vector<8x32xbf16>, vector<32x128xbf16>, vector<8x128xf32> -> vector<8x128xf32>
    %c0_18 = arith.constant 0 : index
    %c0_19 = arith.constant 0 : index
    %43 = vector.load %arg5[%c0_18, %c0_19] : memref<1x128xf32, #tpu.memory_space<vmem>>, vector<1x128xf32>
    %44 = vector.broadcast %43 : vector<1x128xf32> to vector<8x128xf32>
    %45 = arith.addf %42, %44 : vector<8x128xf32>
    %c0_20 = arith.constant 0 : index
    %c0_21 = arith.constant 0 : index
    %46 = vector.load %arg6[%c0_20, %c0_21] : memref<8x128xf32, #tpu.memory_space<vmem>>, vector<8x128xf32>
    tpu.vector_store %arg6[%c0_20, %c0_21], %45 {strides = array<i32>} : memref<8x128xf32, #tpu.memory_space<vmem>>, vector<8x128xf32>,
    return
  }
  func.func @transform_0(%arg0: i32) -> (i32, i32) {
    %c0_i32 = arith.constant 0 : i32
    %c0_i32_0 = arith.constant 0 : i32
    return %arg0, %c0_i32 : i32, i32
  }
  func.func @transform_1(%arg0: i32) -> (i32, i32) {
    %c0_i32 = arith.constant 0 : i32
    %c0_i32_0 = arith.constant 0 : i32
    %c0_i32_1 = arith.constant 0 : i32
    return %c0_i32, %c0_i32_0 : i32, i32
  }
  func.func @transform_2(%arg0: i32) -> (i32, i32) {
    %c0_i32 = arith.constant 0 : i32
    %c0_i32_0 = arith.constant 0 : i32
    %c0_i32_1 = arith.constant 0 : i32
    return %c0_i32, %c0_i32_0 : i32, i32
  }
  func.func @transform_3(%arg0: i32) -> (i32, i32) {
    %c0_i32 = arith.constant 0 : i32
    %c0_i32_0 = arith.constant 0 : i32
    %c0_i32_1 = arith.constant 0 : i32
    return %c0_i32, %c0_i32_0 : i32, i32
  }
  func.func @transform_4(%arg0: i32) -> (i32, i32) {
    %c0_i32 = arith.constant 0 : i32
    %c0_i32_0 = arith.constant 0 : i32
    %c0_i32_1 = arith.constant 0 : i32
    return %c0_i32, %c0_i32_0 : i32, i32
  }
  func.func @transform_5(%arg0: i32) -> (i32, i32) {
    %c0_i32 = arith.constant 0 : i32
    %c0_i32_0 = arith.constant 0 : i32
    return %arg0, %c0_i32 : i32, i32
  }
}

</mosaic_0001>

<llo_original>
// kernel: tpu_custom_call.1
$region0: #{tpu_custom_call.1}
  #allocation0 [shape = 'u32[]', space=smem, size = 0x4, offset = 0x4, fixed_abs, tag = 'smem constant byte address 0x4 - core index']
  #allocation1 [shape = 'u32[144,128]{1,0:T(1,128)}', space=vmem, size = 0x12000, scoped, tag = 'internal scratch']
  %s0 = inlined_call_operand.hbm [shape: f32[8,32], index: 0, kind: input, shape index: {}]
  %s1 = inlined_call_operand.hbm [shape: bf16[32,32], index: 1, kind: input, shape index: {}]
  %s2 = inlined_call_operand.vmem [shape: f32[1,32], index: 2, kind: input, shape index: {}]
  %s3 = inlined_call_operand.hbm [shape: bf16[32,128], index: 3, kind: input, shape index: {}]
  %s4 = inlined_call_operand.vmem [shape: f32[1,128], index: 4, kind: input, shape index: {}]
  %s5 = inlined_call_operand.hbm [shape: f32[8,128], index: 5, kind: output, shape index: {}]
  %s6 = sld [smem:[#allocation0]]
  $region42: #{tpu_custom_call.1} parent=0
    _
  %s8 = ssub.s32 1, %s6
  %s9 = scalar_select 0, %s8, %s6
  $region1: #{tpu_custom_call.1} parent=0
    #allocation2 [shape = 'u8[4096]{0}', space=vmem, size = 0x1000, scoped, tag = 'input window, operand 0, single buffered']
    #allocation3 [shape = 's32[1]{0}', space=sflag, size = 0x4, scoped, tag = 'scoped memory for tpu_custom_call.1']
    #allocation4 [shape = 's32[1]{0}', space=sflag, size = 0x4, scoped, tag = 'scoped memory for tpu_custom_call.1']
    #allocation5 [shape = 'u8[8192]{0}', space=vmem, size = 0x2000, scoped, tag = 'input window, operand 1, single buffered']
    #allocation6 [shape = 's32[1]{0}', space=sflag, size = 0x4, scoped, tag = 'scoped memory for tpu_custom_call.1']
    #allocation7 [shape = 'u8[8192]{0}', space=vmem, size = 0x2000, scoped, tag = 'input window, operand 3, single buffered']
    #allocation8 [shape = 'u8[4096]{0}', space=vmem, size = 0x1000, scoped, tag = 'output window, operand 0, single buffered']
    %10 = vsyncpa [#allocation3], 0
    %11 = vsyncpa [#allocation6], 0
    %12 = vsyncpa [#allocation4], 0
    // Predicated region
    $region2: #{tpu_custom_call.1} parent=1 // pred_check
      _
    $region3: #{tpu_custom_call.1} parent=1 // pred_check_branch
      %14 = sbr.rel (0) target = $region5
    $region4: #{tpu_custom_call.1} parent=1 // pred_region
      %s16 = ssub.s32 128, 128
      %17 = vsyncadd [#allocation3], %s16
      %s19 = sshll.u32 [#allocation2], 4
      %s20 = int_to_ptr.vmem [resolvable:$true] %s19
      %22 = dma.hbm_to_vmem [thread:$0]  %s0, 128, %s20, [#allocation3]
    $region5: #{tpu_custom_call.1} parent=1 // pred_fallthru
      _
    // Predicated region
    $region6: #{tpu_custom_call.1} parent=1 // pred_check
      _
    $region7: #{tpu_custom_call.1} parent=1 // pred_check_branch
      %24 = sbr.rel (0) target = $region9
    $region8: #{tpu_custom_call.1} parent=1 // pred_region
      %s26 = ssub.s32 256, 256
      %27 = vsyncadd [#allocation6], %s26
      %s28 = sshll.u32 [#allocation5], 4
      %s29 = int_to_ptr.vmem [resolvable:$true] %s28
      %34 = dma.hbm_to_vmem [thread:$0]  %s1, 256, %s29, [#allocation6], 64, 64, 4
    $region9: #{tpu_custom_call.1} parent=1 // pred_fallthru
      _
    // Predicated region
    $region10: #{tpu_custom_call.1} parent=1 // pred_check
      _
    $region11: #{tpu_custom_call.1} parent=1 // pred_check_branch
      %36 = sbr.rel (0) target = $region13
    $region12: #{tpu_custom_call.1} parent=1 // pred_region
      _
    $region13: #{tpu_custom_call.1} parent=1 // pred_fallthru
      _
    // Predicated region
    $region14: #{tpu_custom_call.1} parent=1 // pred_check
      _
    $region15: #{tpu_custom_call.1} parent=1 // pred_check_branch
      %38 = sbr.rel (0) target = $region17
    $region16: #{tpu_custom_call.1} parent=1 // pred_region
      %s40 = ssub.s32 256, 256
      %41 = vsyncadd [#allocation6], %s40
      %s42 = sshll.u32 [#allocation7], 4
      %s43 = int_to_ptr.vmem [resolvable:$true] %s42
      %48 = dma.hbm_to_vmem [thread:$0]  %s3, 256, %s43, [#allocation6], 64, 64, 4
    $region17: #{tpu_custom_call.1} parent=1 // pred_fallthru
      _
    // Predicated region
    $region18: #{tpu_custom_call.1} parent=1 // pred_check
      _
    $region19: #{tpu_custom_call.1} parent=1 // pred_check_branch
      %50 = sbr.rel (0) target = $region21
    $region20: #{tpu_custom_call.1} parent=1 // pred_region
      _
    $region21: #{tpu_custom_call.1} parent=1 // pred_fallthru
      _
    // Predicated region
    $region22: #{tpu_custom_call.1} parent=1 // pred_check
      _
    $region23: #{tpu_custom_call.1} parent=1 // pred_check_branch
      %52 = sbr.rel (0) target = $region25
    $region24: #{tpu_custom_call.1} parent=1 // pred_region
      %53 = dma.done [#allocation3], 128
    $region25: #{tpu_custom_call.1} parent=1 // pred_fallthru
      _
    // Predicated region
    $region26: #{tpu_custom_call.1} parent=1 // pred_check
      _
    $region27: #{tpu_custom_call.1} parent=1 // pred_check_branch
      %55 = sbr.rel (0) target = $region29
    $region28: #{tpu_custom_call.1} parent=1 // pred_region
      %56 = dma.done [#allocation6], 256
    $region29: #{tpu_custom_call.1} parent=1 // pred_fallthru
      _
    // Predicated region
    $region30: #{tpu_custom_call.1} parent=1 // pred_check
      _
    $region31: #{tpu_custom_call.1} parent=1 // pred_check_branch
      %58 = sbr.rel (0) target = $region33
    $region32: #{tpu_custom_call.1} parent=1 // pred_region
      %59 = dma.done [#allocation6], 256
    $region33: #{tpu_custom_call.1} parent=1 // pred_fallthru
      _
    %v61 = vld [vmem:[#allocation2] sm:$0xff]
    %v62 = vpack.c.bf16 %v61, %v61
    %v63 = vld [vmem:[#allocation5] sm:$0xf]
    %v64 = vld [vmem:[#allocation5 + $0x4] sm:$0xf]
    %v65 = vld [vmem:[#allocation5 + $0x8] sm:$0xf]
    %v66 = vld [vmem:[#allocation5 + $0xc] sm:$0xf]
    %v67 = vld [vmem:[%s2] sm:$0x1]
    %v69 = vlaneseq
    %v70 = vshrl.u32 %v69, 7
    %v71 = vsub.s32 0, %v70
    %v72 = vrot.slane %v67, %v71
    %v78 = vunpack.c.l.b16 %v63
    %v79 = vunpack.c.l.b16 %v64
    %v80 = vunpack.c.l.b16 %v65
    %v81 = vunpack.c.l.b16 %v66
    %v82 = vpack.c.b16 %v79, %v78
    %v83 = vpack.c.b16 %v81, %v80
    %vm86 = vcmask 261120
    %v88 = vsel %vm86, %v62, 0
    %90 = vmatprep.subr.bf16.mxu0 0
    %91 = vmatpush1.bf16.msra.mxu0 %v82
    %92 = vmatprep.subr.bf16.mxu0 0
    %93 = vmatpush1.bf16.msra.mxu0 %v83
    %94 = vmatprep.subr.bf16.mxu0 0
    %95 = vmatpush1.bf16.msra.mxu0 0
    %96 = vmatprep.subr.bf16.mxu0 0
    %97 = vmatpush1.bf16.msra.mxu0 0
    %98 = vmatprep.subr.bf16.mxu0 0
    %99 = vmatpush1.bf16.msra.mxu0 0
    %100 = vmatprep.subr.bf16.mxu0 0
    %101 = vmatpush1.bf16.msra.mxu0 0
    %102 = vmatprep.subr.bf16.mxu0 0
    %103 = vmatpush1.bf16.msra.mxu0 0
    %104 = vmatprep.subr.bf16.mxu0 0
    %105 = vmatpush1.bf16.msra.mxu0 0
    %106 = vmatprep.subr.bf16.mxu0 0
    %107 = vmatpush1.bf16.msra.mxu0 0
    %108 = vmatprep.subr.bf16.mxu0 0
    %109 = vmatpush1.bf16.msra.mxu0 0
    %110 = vmatprep.subr.bf16.mxu0 0
    %111 = vmatpush1.bf16.msra.mxu0 0
    %112 = vmatprep.subr.bf16.mxu0 0
    %113 = vmatpush1.bf16.msra.mxu0 0
    %114 = vmatprep.subr.bf16.mxu0 0
    %115 = vmatpush1.bf16.msra.mxu0 0
    %116 = vmatprep.subr.bf16.mxu0 0
    %117 = vmatpush1.bf16.msra.mxu0 0
    %118 = vmatprep.subr.bf16.mxu0 0
    %119 = vmatpush1.bf16.msra.mxu0 0
    %120 = vmatprep.subr.bf16.mxu0 0
    %121 = vmatpush1.bf16.msra.mxu0 0
    %122 = vmatprep.mubr.bf16.mxu0 0
    %123 = vmatmul.mubr.bf16.gmra.mrb[0].mxu0 %v88
    %v124 = vpop.f32.mrb[0].mxu0
    %v125 = vadd.f32 %v72, %v124
    %v126 = vpop.f32.mrb[0].mxu0
    %v127 = vpop.f32.mrb[0].mxu0
    %v128 = vpop.f32.mrb[0].mxu0
    %129 = vdwg.mxu0
    %v130 = vand.u32 2147483647, %v125
    %v131 = vsub.f32 0.0, %v130
    %v132 = vmul.f32 %v131, 1.442695
    %v133 = vpow.pop %v132
    %vm134 = vcmp.ge.f32.partialorder %v125, 0.0
    %v135 = vmul.f32 %v133, 2.0
    %v136 = vadd.f32 %v135, 1.0
    %v137 = vadd.f32 %v133, 2.0
    %v138 = vmul.f32 %v133, %v137
    %v139 = vsel %vm134, %v136, %v138
    %v140 = vmul.f32 %v135, %v133
    %v141 = vadd.f32 %v136, %v140
    %v142 = vmul.f32 %v133, %v133
    %v143 = vadd.f32 %v142, %v135
    %v144 = vadd.f32 %v143, 2.0
    %v145 = vsel %vm134, %v141, %v144
    %v146 = vmul.f32 %v125, %v139
    %v147 = vrcp.pop %v145
    %v148 = vmul.f32 %v146, %v147
    %v149 = vadd.f32 %v61, %v148
    %v150 = vpack.c.bf16 %v149, %v149
    %v151 = vld [vmem:[#allocation7] sm:$0xf]
    %v152 = vld [vmem:[#allocation7 + $0x4] sm:$0xf]
    %v153 = vld [vmem:[#allocation7 + $0x8] sm:$0xf]
    %v154 = vld [vmem:[#allocation7 + $0xc] sm:$0xf]
    %v155 = vld [vmem:[%s4] sm:$0x1]
    %v157 = vlaneseq
    %v158 = vshrl.u32 %v157, 7
    %v159 = vsub.s32 0, %v158
    %v160 = vrot.slane %v155, %v159
    %v166 = vunpack.c.l.b16 %v151
    %v167 = vunpack.c.l.b16 %v152
    %v168 = vunpack.c.l.b16 %v153
    %v169 = vunpack.c.l.b16 %v154
    %v170 = vpack.c.b16 %v167, %v166
    %v171 = vpack.c.b16 %v169, %v168
    %v175 = vsel %vm86, %v150, 0
    %177 = vmatprep.subr.bf16.mxu0 0
    %178 = vmatpush1.bf16.msra.mxu0 %v170
    %179 = vmatprep.subr.bf16.mxu0 0
    %180 = vmatpush1.bf16.msra.mxu0 %v171
    %181 = vmatprep.subr.bf16.mxu0 0
    %182 = vmatpush1.bf16.msra.mxu0 0
    %183 = vmatprep.subr.bf16.mxu0 0
    %184 = vmatpush1.bf16.msra.mxu0 0
    %185 = vmatprep.subr.bf16.mxu0 0
    %186 = vmatpush1.bf16.msra.mxu0 0
    %187 = vmatprep.subr.bf16.mxu0 0
    %188 = vmatpush1.bf16.msra.mxu0 0
    %189 = vmatprep.subr.bf16.mxu0 0
    %190 = vmatpush1.bf16.msra.mxu0 0
    %191 = vmatprep.subr.bf16.mxu0 0
    %192 = vmatpush1.bf16.msra.mxu0 0
    %193 = vmatprep.subr.bf16.mxu0 0
    %194 = vmatpush1.bf16.msra.mxu0 0
    %195 = vmatprep.subr.bf16.mxu0 0
    %196 = vmatpush1.bf16.msra.mxu0 0
    %197 = vmatprep.subr.bf16.mxu0 0
    %198 = vmatpush1.bf16.msra.mxu0 0
    %199 = vmatprep.subr.bf16.mxu0 0
    %200 = vmatpush1.bf16.msra.mxu0 0
    %201 = vmatprep.subr.bf16.mxu0 0
    %202 = vmatpush1.bf16.msra.mxu0 0
    %203 = vmatprep.subr.bf16.mxu0 0
    %204 = vmatpush1.bf16.msra.mxu0 0
    %205 = vmatprep.subr.bf16.mxu0 0
    %206 = vmatpush1.bf16.msra.mxu0 0
    %207 = vmatprep.subr.bf16.mxu0 0
    %208 = vmatpush1.bf16.msra.mxu0 0
    %209 = vmatprep.mubr.bf16.mxu0 0
    %210 = vmatmul.mubr.bf16.gmra.mrb[0].mxu0 %v175
    %v211 = vpop.f32.mrb[0].mxu0
    %v212 = vadd.f32 %v160, %v211
    %v213 = vpop.f32.mrb[0].mxu0
    %v214 = vpop.f32.mrb[0].mxu0
    %v215 = vpop.f32.mrb[0].mxu0
    %216 = vdwg.mxu0
    %217 = vst [vmem:[#allocation8] sm:$0xff] %v212
    // Predicated region
    $region34: #{tpu_custom_call.1} parent=1 // pred_check
      _
    $region35: #{tpu_custom_call.1} parent=1 // pred_check_branch
      %219 = sbr.rel (0) target = $region37
    $region36: #{tpu_custom_call.1} parent=1 // pred_region
      %s221 = ssub.s32 128, 128
      %222 = vsyncadd [#allocation4], %s221
      %s224 = sshll.u32 [#allocation8], 4
      %s225 = int_to_ptr.vmem [resolvable:$true] %s224
      %227 = dma.vmem_to_hbm [thread:$0]  %s225, 128, %s5, [#allocation4]
    $region37: #{tpu_custom_call.1} parent=1 // pred_fallthru
      _
    // Predicated region
    $region38: #{tpu_custom_call.1} parent=1 // pred_check
      _
    $region39: #{tpu_custom_call.1} parent=1 // pred_check_branch
      %229 = sbr.rel (0) target = $region41
    $region40: #{tpu_custom_call.1} parent=1 // pred_region
      %230 = dma.done [#allocation4], 128
    $region41: #{tpu_custom_call.1} parent=1 // pred_fallthru
      _
    %231 = vsyncpa [#allocation3], 1
    %232 = vsyncpa [#allocation6], 1
    %233 = vsyncpa [#allocation4], 1

</llo_original>
